<compile_context>
chip_gen: v6e
topology: v6e:2x2x1
jax: 0.10.0
libtpu: 0.0.40
codegen_flags: <defaults>
</compile_context>

<pallas_src>
import jax
import jax.numpy as jnp
from jax.experimental import pallas as pl
from jax.experimental.pallas import tpu as pltpu

_LANES = 128
_MAX_TILE_ROWS = 1024  # (2, 1024, 128) f32 = 1 MiB/buffer; 2 MiB double-buffered


def _make_kernel(inv_n: float):
    def aiw_kernel(preds_ref, out_ref, acc_ref):
        # preds_ref: (2, tile_rows, 128) f32  (row 0 = upp, row 1 = low)
        # out_ref:   (1, 1) f32
        # acc_ref:   (1, 1) f32 VMEM scratch, persistent across the grid
        @pl.when(pl.program_id(0) == 0)
        def _init():
            acc_ref[...] = jnp.zeros_like(acc_ref)

        upp = preds_ref[0]            # (tile_rows, 128), full-lane loads
        low = preds_ref[1]
        acc_ref[...] += jnp.sum(jnp.abs(upp - low), keepdims=True)

        @pl.when(pl.program_id(0) == pl.num_programs(0) - 1)
        def _finalize():
            out_ref[...] = acc_ref[...] * jnp.float32(inv_n)

    return aiw_kernel


def aiw_loss_nost(preds: jax.Array, target: jax.Array) -> jax.Array:
    """preds: (N, 2), target: (N, 1) -> scalar f32 loss = mean(|preds[:,0]-preds[:,1]|)."""
    assert preds.shape[0] == target.shape[0]
    n = preds.shape[0]
    preds = preds.astype(jnp.float32)

    # Lane-dense re-layout: (N, 2) -> (2, N) -> zero-pad -> (2, n_rows_pad, 128).
    n_rows = -(-n // _LANES)                               # ceil(N / 128)
    tile_rows = min(_MAX_TILE_ROWS, -(-n_rows // 8) * 8)   # multiple of 8, capped
    n_rows_pad = -(-n_rows // tile_rows) * tile_rows
    n_pad = n_rows_pad * _LANES

    preds_t = preds.T                                      # (2, N)
    if n_pad != n:
        preds_t = jnp.pad(preds_t, ((0, 0), (0, n_pad - n)))
    preds_blocks = preds_t.reshape(2, n_rows_pad, _LANES)

    grid = (n_rows_pad // tile_rows,)
    kernel = _make_kernel(1.0 / float(n))

    out = pl.pallas_call(
        kernel,
        out_shape=jax.ShapeDtypeStruct((1, 1), jnp.float32),
        grid_spec=pltpu.PrefetchScalarGridSpec(
            num_scalar_prefetch=0,
            grid=grid,
            in_specs=[pl.BlockSpec((2, tile_rows, _LANES), lambda i: (0, i, 0))],
            out_specs=pl.BlockSpec((1, 1), lambda i: (0, 0)),
            scratch_shapes=[pltpu.VMEM((1, 1), jnp.float32)],
        ),
        compiler_params=pltpu.CompilerParams(
            dimension_semantics=("arbitrary",),
        ),
    )(preds_blocks)
    return out[0, 0]


def _reference(preds):
    upp = preds[:, 0:1]
    low = preds[:, 1:2]
    return jnp.mean(jnp.abs(upp - low))


if __name__ == "__main__":
    key = jax.random.PRNGKey(0)
    k1, k2, k3 = jax.random.split(key, 3)

    # Small primary example: batch N=8, preds (N, 2), target (N, 1).
    N = 8
    preds = jax.random.normal(k1, (N, 2), dtype=jnp.float32)
    target = jax.random.normal(k2, (N, 1), dtype=jnp.float32)

    loss = aiw_loss_nost(preds, target)
    jax.block_until_ready(loss)
    ref = _reference(preds.astype(jnp.float32))
    assert jnp.allclose(loss, ref, rtol=1e-6, atol=1e-6), (loss, ref)

    # Secondary check exercising padding / multi-row tiles (non-multiple of 128).
    N2 = 300
    preds2 = jax.random.normal(k3, (N2, 2), dtype=jnp.float32)
    target2 = jnp.zeros((N2, 1), dtype=jnp.float32)
    loss2 = aiw_loss_nost(preds2, target2)
    jax.block_until_ready(loss2)
    ref2 = _reference(preds2)
    assert jnp.allclose(loss2, ref2, rtol=1e-5, atol=1e-6), (loss2, ref2)

    print("KERNEL_OK")
</pallas_src>

<mosaic_0001>
module attributes {stable_mosaic.version = 11 : i64} {
  func.func @aiw_kernel(%arg0: i32, %arg1: memref<2x8x128xf32, #tpu.memory_space<vmem>>, %arg2: memref<1x1xf32, #tpu.memory_space<vmem>>, %arg3: memref<1x1xf32, #tpu.memory_space<vmem>>) attributes {dimension_semantics = [#tpu.dimension_semantics<arbitrary>], iteration_bounds = array<i64: 1>, scalar_prefetch = 0 : i64, scratch_operands = 1 : i64, tpu.core_type = #tpu.core_type<tc>, window_params = [{transform_indices = @transform_0, window_bounds = array<i64: 2, 8, 128>}, {pipeline_mode = #tpu.pipeline_mode<synchronous>, transform_indices = @transform_1, window_bounds = array<i64: 1, 1>}]} {
    %c0_i32 = arith.constant 0 : i32
    %0 = arith.cmpi eq, %arg0, %c0_i32 : i32
    %1 = arith.extui %0 : i1 to i32
    %c0_i32_0 = arith.constant 0 : i32
    %2 = arith.cmpi ne, %1, %c0_i32_0 : i32
    scf.if %2 {
      %cst_11 = arith.constant 0.000000e+00 : f32
      %20 = vector.broadcast %cst_11 : f32 to vector<1x1xf32>
      %c0_12 = arith.constant 0 : index
      %c0_13 = arith.constant 0 : index
      %21 = vector.load %arg3[%c0_12, %c0_13] : memref<1x1xf32, #tpu.memory_space<vmem>>, vector<1x1xf32>
      tpu.vector_store %arg3[%c0_12, %c0_13], %20 {strides = array<i32>} : memref<1x1xf32, #tpu.memory_space<vmem>>, vector<1x1xf32>,
    } else {
    }
    %c0 = arith.constant 0 : index
    %c0_1 = arith.constant 0 : index
    %c0_2 = arith.constant 0 : index
    %3 = vector.load %arg1[%c0, %c0_1, %c0_2] : memref<2x8x128xf32, #tpu.memory_space<vmem>>, vector<1x8x128xf32>
    %4 = vector.shape_cast %3 : vector<1x8x128xf32> to vector<8x128xf32>
    %c1 = arith.constant 1 : index
    %c0_3 = arith.constant 0 : index
    %c0_4 = arith.constant 0 : index
    %5 = vector.load %arg1[%c1, %c0_3, %c0_4] : memref<2x8x128xf32, #tpu.memory_space<vmem>>, vector<1x8x128xf32>
    %6 = vector.shape_cast %5 : vector<1x8x128xf32> to vector<8x128xf32>
    %c0_5 = arith.constant 0 : index
    %c0_6 = arith.constant 0 : index
    %7 = vector.load %arg3[%c0_5, %c0_6] : memref<1x1xf32, #tpu.memory_space<vmem>>, vector<1x1xf32>
    %8 = arith.subf %4, %6 : vector<8x128xf32>
    %9 = math.absf %8 : vector<8x128xf32>
    %10 = vector.shape_cast %9 : vector<8x128xf32> to vector<1x8x128xf32>
    %cst = arith.constant dense<0.000000e+00> : vector<1xf32>
    %11 = vector.multi_reduction <add>, %10, %cst [1, 2] : vector<1x8x128xf32> to vector<1xf32>
    %12 = vector.shape_cast %11 : vector<1xf32> to vector<1x1x1xf32>
    %13 = vector.extract %12[0, 0, 0] : f32 from vector<1x1x1xf32>
    %14 = vector.broadcast %13 : f32 to vector<1x1xf32>
    %15 = arith.addf %7, %14 : vector<1x1xf32>
    %c0_7 = arith.constant 0 : index
    %c0_8 = arith.constant 0 : index
    %16 = vector.load %arg3[%c0_7, %c0_8] : memref<1x1xf32, #tpu.memory_space<vmem>>, vector<1x1xf32>
    tpu.vector_store %arg3[%c0_7, %c0_8], %15 {strides = array<i32>} : memref<1x1xf32, #tpu.memory_space<vmem>>, vector<1x1xf32>,
    %c0_i32_9 = arith.constant 0 : i32
    %17 = arith.cmpi eq, %arg0, %c0_i32_9 : i32
    %18 = arith.extui %17 : i1 to i32
    %c0_i32_10 = arith.constant 0 : i32
    %19 = arith.cmpi ne, %18, %c0_i32_10 : i32
    scf.if %19 {
      %c0_11 = arith.constant 0 : index
      %c0_12 = arith.constant 0 : index
      %20 = vector.load %arg3[%c0_11, %c0_12] : memref<1x1xf32, #tpu.memory_space<vmem>>, vector<1x1xf32>
      %cst_13 = arith.constant 1.250000e-01 : f32
      %21 = vector.broadcast %cst_13 : f32 to vector<1x1xf32>
      %22 = arith.mulf %20, %21 : vector<1x1xf32>
      %c0_14 = arith.constant 0 : index
      %c0_15 = arith.constant 0 : index
      %23 = vector.load %arg2[%c0_14, %c0_15] : memref<1x1xf32, #tpu.memory_space<vmem>>, vector<1x1xf32>
      tpu.vector_store %arg2[%c0_14, %c0_15], %22 {strides = array<i32>} : memref<1x1xf32, #tpu.memory_space<vmem>>, vector<1x1xf32>,
    } else {
    }
    return
  }
  func.func @transform_0(%arg0: i32) -> (i32, i32, i32) {
    %c0_i32 = arith.constant 0 : i32
    %c0_i32_0 = arith.constant 0 : i32
    %c0_i32_1 = arith.constant 0 : i32
    return %c0_i32, %arg0, %c0_i32_0 : i32, i32, i32
  }
  func.func @transform_1(%arg0: i32) -> (i32, i32) {
    %c0_i32 = arith.constant 0 : i32
    %c0_i32_0 = arith.constant 0 : i32
    %c0_i32_1 = arith.constant 0 : i32
    return %c0_i32, %c0_i32_0 : i32, i32
  }
}

</mosaic_0001>

<llo_original>
// kernel: tpu_custom_call.1
$region0: #{tpu_custom_call.1}
  #allocation0 [shape = 'u32[]', space=smem, size = 0x4, offset = 0x4, fixed_abs, tag = 'smem constant byte address 0x4 - core index']
  #allocation1 [shape = 'u32[144,128]{1,0:T(1,128)}', space=vmem, size = 0x12000, scoped, tag = 'internal scratch']
  #allocation2 [shape = 'f32[1,1]{1,0:T(1,128)}', space=vmem, size = 0x200, scoped, tag = 'scratch operand']
  %s0 = inlined_call_operand.hbm [shape: f32[2,8,128], index: 0, kind: input, shape index: {}]
  %s1 = inlined_call_operand.hbm [shape: f32[1,1], index: 1, kind: output, shape index: {}]
  %s2 = sld [smem:[#allocation0]]
  $region26: #{tpu_custom_call.1} parent=0
    _
  %s4 = ssub.s32 1, %s2
  %s5 = scalar_select 0, %s4, %s2
  $region1: #{tpu_custom_call.1} parent=0
    #allocation3 [shape = 'u8[8192]{0}', space=vmem, size = 0x2000, scoped, tag = 'input window, operand 0, single buffered']
    #allocation4 [shape = 's32[1]{0}', space=sflag, size = 0x4, scoped, tag = 'scoped memory for tpu_custom_call.1']
    #allocation5 [shape = 's32[1]{0}', space=sflag, size = 0x4, scoped, tag = 'scoped memory for tpu_custom_call.1']
    #allocation6 [shape = 'u8[512]{0}', space=vmem, size = 0x400, scoped, tag = 'output window, operand 0, single buffered']
    %6 = vsyncpa [#allocation4], 0
    %7 = vsyncpa [#allocation5], 0
    // Predicated region
    $region2: #{tpu_custom_call.1} parent=1 // pred_check
      _
    $region3: #{tpu_custom_call.1} parent=1 // pred_check_branch
      %9 = sbr.rel (0) target = $region5
    $region4: #{tpu_custom_call.1} parent=1 // pred_region
      %s11 = ssub.s32 256, 256
      %12 = vsyncadd [#allocation4], %s11
      %s13 = sshll.u32 [#allocation3], 4
      %s14 = int_to_ptr.vmem [resolvable:$true] %s13
      %19 = dma.hbm_to_vmem [thread:$0]  %s0, 256, %s14, [#allocation4], 128, 128, 8
    $region5: #{tpu_custom_call.1} parent=1 // pred_fallthru
      _
    // Predicated region
    $region6: #{tpu_custom_call.1} parent=1 // pred_check
      _
    $region7: #{tpu_custom_call.1} parent=1 // pred_check_branch
      %21 = sbr.rel (0) target = $region9
    $region8: #{tpu_custom_call.1} parent=1 // pred_region
      %22 = dma.done [#allocation4], 256
    $region9: #{tpu_custom_call.1} parent=1 // pred_fallthru
      _
    %p23 = scmp.eq.s32.totalorder 0, 0
    // Predicated region
    $region10: #{tpu_custom_call.1} parent=1 // pred_check
      %p24 = pneg %p23
    $region11: #{tpu_custom_call.1} parent=1 // pred_check_branch
      %26 = sbr.rel (%p24) target = $region13
    $region12: #{tpu_custom_call.1} parent=1 // pred_region
      %vm27 = vcmask 0
      %28 = vst.msk [vmem:[#allocation2] sm:$0x1] %vm27, 0.0
    $region13: #{tpu_custom_call.1} parent=1 // pred_fallthru
      _
    %v29 = vld [vmem:[#allocation3] sm:$0xff]
    %s30 = scalar_lea.vmem [#allocation3], 8
    %v31 = vld [vmem:[%s30] sm:$0xff]
    %v32 = vld [vmem:[#allocation2] sm:$0x1]
    %v33 = vsub.f32 %v29, %v31
    %v34 = vand.u32 2147483647, %v33
    %35 = vadd.xlane.f32.xlu0 %v34
    %v36 = vpop.xlane.xlu0 %35
    %v37 = vrot.slane %v36, 4
    %v38 = vadd.f32 %v36, %v37
    %v39 = vrot.slane %v38, 2
    %v40 = vadd.f32 %v38, %v39
    %v41 = vrot.slane %v40, 1
    %v42 = vadd.f32 %v40, %v41
    %s43 = vtos %v42
    %v44 = vstv %s43
    %v45 = vadd.f32 %v32, %v44
    %vm46 = vcmask 0
    %47 = vst.msk [vmem:[#allocation2] sm:$0x1] %vm46, %v45
    // Predicated region
    $region14: #{tpu_custom_call.1} parent=1 // pred_check
      %p48 = pneg %p23
    $region15: #{tpu_custom_call.1} parent=1 // pred_check_branch
      %50 = sbr.rel (%p48) target = $region17
    $region16: #{tpu_custom_call.1} parent=1 // pred_region
      %v51 = vld [vmem:[#allocation2] sm:$0x1]
      %v52 = vmul.f32 %v51, 0.125
      %53 = vst.msk [vmem:[#allocation6] sm:$0x1] %vm46, %v52
    $region17: #{tpu_custom_call.1} parent=1 // pred_fallthru
      _
    // Predicated region
    $region18: #{tpu_custom_call.1} parent=1 // pred_check
      _
    $region19: #{tpu_custom_call.1} parent=1 // pred_check_branch
      %55 = sbr.rel (0) target = $region21
    $region20: #{tpu_custom_call.1} parent=1 // pred_region
      %s57 = ssub.s32 16, 16
      %58 = vsyncadd [#allocation5], %s57
      %s60 = sshll.u32 [#allocation6], 4
      %s61 = int_to_ptr.vmem [resolvable:$true] %s60
      %63 = dma.vmem_to_hbm [thread:$0]  %s61, 16, %s1, [#allocation5]
    $region21: #{tpu_custom_call.1} parent=1 // pred_fallthru
      _
    // Predicated region
    $region22: #{tpu_custom_call.1} parent=1 // pred_check
      _
    $region23: #{tpu_custom_call.1} parent=1 // pred_check_branch
      %65 = sbr.rel (0) target = $region25
    $region24: #{tpu_custom_call.1} parent=1 // pred_region
      %66 = dma.done [#allocation5], 16
    $region25: #{tpu_custom_call.1} parent=1 // pred_fallthru
      _
    %67 = vsyncpa [#allocation4], 1
    %68 = vsyncpa [#allocation5], 1

</llo_original>
